<compile_context>
chip_gen: v7x
topology: tpu7x:2x2x1
jax: 0.10.0
libtpu: 0.0.40
codegen_flags: <defaults>
</compile_context>

<pallas_src>
import math
from functools import partial

import jax
import jax.numpy as jnp
from jax import lax
from jax.experimental import pallas as pl
from jax.experimental.pallas import tpu as pltpu

_INV_SQRT2 = 0.7071067811865476
_SQRT_2_OVER_PI = 0.7978845608028654
_GELU_COEF = 0.044715


def _ffn_kernel(x_ref, w1_ref, b1_ref, w2_ref, b2_ref, o_ref, acc_ref, *,
                approximate_gelu: bool):
    k = pl.program_id(1)

    @pl.when(k == 0)
    def _init():
        acc_ref[...] = jnp.zeros_like(acc_ref)

    # fc1 chunk: (tm, E) @ (E, tk_h) in bf16 on the MXU, f32 accumulation.
    x = x_ref[...].astype(jnp.bfloat16)
    h = jnp.dot(x, w1_ref[...], preferred_element_type=jnp.float32)
    h = h + b1_ref[...]

    if approximate_gelu:
        # tanh GELU: transcendental executes on the EUP slot (VALU stays free).
        inner = _SQRT_2_OVER_PI * (h + _GELU_COEF * (h * h * h))
        h = 0.5 * h * (1.0 + jnp.tanh(inner))
    else:
        # Exact erf GELU (torch.nn.GELU() default); slower VALU polynomial.
        h = 0.5 * h * (1.0 + lax.erf(h * _INV_SQRT2))

    # fc2 partial product: (tm, tk_h) @ (tk_h, E), accumulated in f32 VMEM.
    acc_ref[...] += jnp.dot(h.astype(jnp.bfloat16), w2_ref[...],
                            preferred_element_type=jnp.float32)

    @pl.when(k == pl.num_programs(1) - 1)
    def _finalize():
        o_ref[...] = (acc_ref[...] + b2_ref[...]).astype(o_ref.dtype)


def feed_forward(x, w1, b1, w2, b2, *, tile_m=512, hidden_chunk=1024,
                 approximate_gelu=True):
    """Pallas equivalent of FeedForward.forward (inference).

    Args:
      x:  (..., embed_dim) input.
      w1: (embed_dim, hidden_dim)  == fc1.weight.T
      b1: (hidden_dim,)            == fc1.bias
      w2: (hidden_dim, embed_dim)  == fc2.weight.T
      b2: (embed_dim,)             == fc2.bias
    Returns:
      (..., embed_dim) output, same dtype as x.
    """
    orig_shape = x.shape
    E = orig_shape[-1]
    H = w1.shape[1]
    assert w1.shape == (E, H) and w2.shape == (H, E)
    assert b1.shape == (H,) and b2.shape == (E,)

    x2 = x.reshape(-1, E)
    M = x2.shape[0]

    # Row tile: large to amortize per-step overhead; aligned to the sublane
    # packing of the activation dtype (bf16 packs 2 rows per sublane).
    m_align = 16 if x.dtype in (jnp.bfloat16, jnp.float16) else 8
    tm = max(m_align, min(tile_m, M))
    tm = ((tm + m_align - 1) // m_align) * m_align
    # Keep at least 2 row steps so both TensorCores get work on v7x.
    while pl.cdiv(M, tm) < 2 and tm >= 2 * m_align:
        tm //= 2
    n_m = pl.cdiv(M, tm)

    # Hidden-dim chunk: lane-dense multiple of 128 dividing H, else no chunking.
    tk_h = min(hidden_chunk, H)
    if tk_h < H and (H % tk_h != 0 or tk_h % 128 != 0):
        tk_h = H
    n_h = H // tk_h

    # Cast weights to bf16 once here (not per grid step); biases stay f32 so
    # they are added onto the f32 accumulator.
    w1_bf = w1.astype(jnp.bfloat16)
    w2_bf = w2.astype(jnp.bfloat16)
    b1_2d = b1.reshape(1, H).astype(jnp.float32)
    b2_2d = b2.reshape(1, E).astype(jnp.float32)

    out_bytes = x.dtype.itemsize
    # VMEM working set: double-buffered x/out tiles + streamed bf16 weight
    # chunks + biases + the f32 accumulator, plus internal-scratch slack.
    est = (2 * tm * E * x.dtype.itemsize       # x tiles (double buffered)
           + 2 * tm * E * out_bytes            # out tiles
           + 2 * (E * tk_h + tk_h * E) * 2     # bf16 weight chunks
           + 2 * (tk_h + E) * 4                # bias chunks
           + tm * E * 4                        # f32 accumulator
           + (2 << 20))                        # slack
    # Cap at 100 MiB (v5e/v6e); keep tile/chunk sizes such that est stays well
    # below ~56 MiB when targeting v7x (64 MiB/TC).
    vmem_limit = int(min(max(est, 32 * 1024 * 1024), 100 * 1024 * 1024))

    kernel = partial(_ffn_kernel, approximate_gelu=approximate_gelu)

    out2d = pl.pallas_call(
        kernel,
        out_shape=jax.ShapeDtypeStruct((M, E), x.dtype),
        grid=(n_m, n_h),
        in_specs=[
            pl.BlockSpec((tm, E), lambda i, k: (i, 0)),     # x tile (resident over k)
            pl.BlockSpec((E, tk_h), lambda i, k: (0, k)),   # w1 chunk (streams)
            pl.BlockSpec((1, tk_h), lambda i, k: (0, k)),   # b1 chunk
            pl.BlockSpec((tk_h, E), lambda i, k: (k, 0)),   # w2 chunk (streams)
            pl.BlockSpec((1, E), lambda i, k: (0, 0)),      # b2 (resident)
        ],
        out_specs=pl.BlockSpec((tm, E), lambda i, k: (i, 0)),
        scratch_shapes=[pltpu.VMEM((tm, E), jnp.float32)],
        compiler_params=pltpu.CompilerParams(
            dimension_semantics=("parallel", "arbitrary"),
            vmem_limit_bytes=vmem_limit,
        ),
    )(x2, w1_bf, b1_2d, w2_bf, b2_2d)

    return out2d.reshape(orig_shape)


if __name__ == "__main__":
    key = jax.random.PRNGKey(0)
    k_x, k_w1, k_b1, k_w2, k_b2 = jax.random.split(key, 5)

    # Shapes implied by the module: embed_dim=128, hidden_dim=512; small batch/seq.
    batch, seq_len, embed_dim, hidden_dim = 2, 8, 128, 512

    x = jax.random.normal(k_x, (batch, seq_len, embed_dim), dtype=jnp.float32)

    # Linear params stored already transposed: w = weight.T, shape (in, out).
    lim1 = 1.0 / math.sqrt(embed_dim)
    lim2 = 1.0 / math.sqrt(hidden_dim)
    w1 = jax.random.uniform(k_w1, (embed_dim, hidden_dim), jnp.float32, -lim1, lim1)
    b1 = jax.random.uniform(k_b1, (hidden_dim,), jnp.float32, -lim1, lim1)
    w2 = jax.random.uniform(k_w2, (hidden_dim, embed_dim), jnp.float32, -lim2, lim2)
    b2 = jax.random.uniform(k_b2, (embed_dim,), jnp.float32, -lim2, lim2)

    out = feed_forward(x, w1, b1, w2, b2)
    out = jax.block_until_ready(out)

    # Pure-JAX reference with the exact erf GELU (torch.nn.GELU() default);
    # dropout is identity at inference.  Tolerance covers the bf16 MXU inputs
    # and the (default) tanh GELU approximation in the kernel.
    h_ref = x @ w1 + b1
    h_ref = jax.nn.gelu(h_ref, approximate=False)
    ref = h_ref @ w2 + b2

    assert out.shape == (batch, seq_len, embed_dim), out.shape
    max_err = float(jnp.max(jnp.abs(out - ref)))
    assert jnp.allclose(out, ref, atol=2e-2, rtol=2e-2), (
        f"mismatch vs reference (max abs err {max_err})")

    print("KERNEL_OK")
</pallas_src>

<mosaic_0001>
module attributes {stable_mosaic.version = 11 : i64} {
  func.func @_ffn_kernel(%arg0: i32, %arg1: i32, %arg2: memref<8x128xf32, #tpu.memory_space<vmem>>, %arg3: memref<128x512xbf16, #tpu.memory_space<vmem>>, %arg4: memref<1x512xf32, #tpu.memory_space<vmem>>, %arg5: memref<512x128xbf16, #tpu.memory_space<vmem>>, %arg6: memref<1x128xf32, #tpu.memory_space<vmem>>, %arg7: memref<8x128xf32, #tpu.memory_space<vmem>>, %arg8: memref<8x128xf32, #tpu.memory_space<vmem>>) attributes {dimension_semantics = [#tpu.dimension_semantics<parallel>, #tpu.dimension_semantics<arbitrary>], iteration_bounds = array<i64: 2, 1>, scalar_prefetch = 0 : i64, scratch_operands = 1 : i64, tpu.core_type = #tpu.core_type<tc>, window_params = [{transform_indices = @transform_0, window_bounds = array<i64: 8, 128>}, {transform_indices = @transform_1, window_bounds = array<i64: 128, 512>}, {transform_indices = @transform_2, window_bounds = array<i64: 1, 512>}, {transform_indices = @transform_3, window_bounds = array<i64: 512, 128>}, {pipeline_mode = #tpu.pipeline_mode<synchronous>, transform_indices = @transform_4, window_bounds = array<i64: 1, 128>}, {transform_indices = @transform_5, window_bounds = array<i64: 8, 128>}]} {
    %c0_i32 = arith.constant 0 : i32
    %0 = arith.cmpi eq, %arg1, %c0_i32 : i32
    %1 = arith.extui %0 : i1 to i32
    %c0_i32_0 = arith.constant 0 : i32
    %2 = arith.cmpi ne, %1, %c0_i32_0 : i32
    scf.if %2 {
      %cst_19 = arith.constant 0.000000e+00 : f32
      %32 = vector.broadcast %cst_19 : f32 to vector<8x128xf32>
      %c0_20 = arith.constant 0 : index
      %c0_21 = arith.constant 0 : index
      %33 = vector.load %arg8[%c0_20, %c0_21] : memref<8x128xf32, #tpu.memory_space<vmem>>, vector<8x128xf32>
      tpu.vector_store %arg8[%c0_20, %c0_21], %32 {strides = array<i32>} : memref<8x128xf32, #tpu.memory_space<vmem>>, vector<8x128xf32>,
    } else {
    }
    %c0 = arith.constant 0 : index
    %c0_1 = arith.constant 0 : index
    %3 = vector.load %arg2[%c0, %c0_1] : memref<8x128xf32, #tpu.memory_space<vmem>>, vector<8x128xf32>
    %4 = arith.truncf %3 : vector<8x128xf32> to vector<8x128xbf16>
    %c0_2 = arith.constant 0 : index
    %c0_3 = arith.constant 0 : index
    %5 = vector.load %arg3[%c0_2, %c0_3] : memref<128x512xbf16, #tpu.memory_space<vmem>>, vector<128x512xbf16>
    %cst = arith.constant dense<0.000000e+00> : vector<8x512xf32>
    %6 = tpu.matmul %4, %5, %cst {dimension_numbers = #tpu.dot_dimension_numbers<[1], [0], [0], [1], [0, 0, 1, 1], [], []>} : vector<8x128xbf16>, vector<128x512xbf16>, vector<8x512xf32> -> vector<8x512xf32>
    %c0_4 = arith.constant 0 : index
    %c0_5 = arith.constant 0 : index
    %7 = vector.load %arg4[%c0_4, %c0_5] : memref<1x512xf32, #tpu.memory_space<vmem>>, vector<1x512xf32>
    %8 = vector.broadcast %7 : vector<1x512xf32> to vector<8x512xf32>
    %9 = arith.addf %6, %8 : vector<8x512xf32>
    %10 = arith.mulf %9, %9 : vector<8x512xf32>
    %11 = arith.mulf %10, %9 : vector<8x512xf32>
    %cst_6 = arith.constant 4.471500e-02 : f32
    %12 = vector.broadcast %cst_6 : f32 to vector<8x512xf32>
    %13 = arith.mulf %12, %11 : vector<8x512xf32>
    %14 = arith.addf %9, %13 : vector<8x512xf32>
    %cst_7 = arith.constant 0.797884583 : f32
    %15 = vector.broadcast %cst_7 : f32 to vector<8x512xf32>
    %16 = arith.mulf %15, %14 : vector<8x512xf32>
    %cst_8 = arith.constant 5.000000e-01 : f32
    %17 = vector.broadcast %cst_8 : f32 to vector<8x512xf32>
    %18 = arith.mulf %17, %9 : vector<8x512xf32>
    %19 = math.tanh %16 : vector<8x512xf32>
    %cst_9 = arith.constant 1.000000e+00 : f32
    %20 = vector.broadcast %cst_9 : f32 to vector<8x512xf32>
    %21 = arith.addf %20, %19 : vector<8x512xf32>
    %22 = arith.mulf %18, %21 : vector<8x512xf32>
    %c0_10 = arith.constant 0 : index
    %c0_11 = arith.constant 0 : index
    %23 = vector.load %arg8[%c0_10, %c0_11] : memref<8x128xf32, #tpu.memory_space<vmem>>, vector<8x128xf32>
    %24 = arith.truncf %22 : vector<8x512xf32> to vector<8x512xbf16>
    %c0_12 = arith.constant 0 : index
    %c0_13 = arith.constant 0 : index
    %25 = vector.load %arg5[%c0_12, %c0_13] : memref<512x128xbf16, #tpu.memory_space<vmem>>, vector<512x128xbf16>
    %cst_14 = arith.constant dense<0.000000e+00> : vector<8x128xf32>
    %26 = tpu.matmul %24, %25, %cst_14 {dimension_numbers = #tpu.dot_dimension_numbers<[1], [0], [0], [1], [0, 0, 1, 1], [], []>} : vector<8x512xbf16>, vector<512x128xbf16>, vector<8x128xf32> -> vector<8x128xf32>
    %27 = arith.addf %23, %26 : vector<8x128xf32>
    %c0_15 = arith.constant 0 : index
    %c0_16 = arith.constant 0 : index
    %28 = vector.load %arg8[%c0_15, %c0_16] : memref<8x128xf32, #tpu.memory_space<vmem>>, vector<8x128xf32>
    tpu.vector_store %arg8[%c0_15, %c0_16], %27 {strides = array<i32>} : memref<8x128xf32, #tpu.memory_space<vmem>>, vector<8x128xf32>,
    %c0_i32_17 = arith.constant 0 : i32
    %29 = arith.cmpi eq, %arg1, %c0_i32_17 : i32
    %30 = arith.extui %29 : i1 to i32
    %c0_i32_18 = arith.constant 0 : i32
    %31 = arith.cmpi ne, %30, %c0_i32_18 : i32
    scf.if %31 {
      %c0_19 = arith.constant 0 : index
      %c0_20 = arith.constant 0 : index
      %32 = vector.load %arg8[%c0_19, %c0_20] : memref<8x128xf32, #tpu.memory_space<vmem>>, vector<8x128xf32>
      %c0_21 = arith.constant 0 : index
      %c0_22 = arith.constant 0 : index
      %33 = vector.load %arg6[%c0_21, %c0_22] : memref<1x128xf32, #tpu.memory_space<vmem>>, vector<1x128xf32>
      %34 = vector.broadcast %33 : vector<1x128xf32> to vector<8x128xf32>
      %35 = arith.addf %32, %34 : vector<8x128xf32>
      %c0_23 = arith.constant 0 : index
      %c0_24 = arith.constant 0 : index
      %36 = vector.load %arg7[%c0_23, %c0_24] : memref<8x128xf32, #tpu.memory_space<vmem>>, vector<8x128xf32>
      tpu.vector_store %arg7[%c0_23, %c0_24], %35 {strides = array<i32>} : memref<8x128xf32, #tpu.memory_space<vmem>>, vector<8x128xf32>,
    } else {
    }
    return
  }
  func.func @transform_0(%arg0: i32, %arg1: i32) -> (i32, i32) {
    %c0_i32 = arith.constant 0 : i32
    %c0_i32_0 = arith.constant 0 : i32
    return %arg0, %c0_i32 : i32, i32
  }
  func.func @transform_1(%arg0: i32, %arg1: i32) -> (i32, i32) {
    %c0_i32 = arith.constant 0 : i32
    %c0_i32_0 = arith.constant 0 : i32
    return %c0_i32, %arg1 : i32, i32
  }
  func.func @transform_2(%arg0: i32, %arg1: i32) -> (i32, i32) {
    %c0_i32 = arith.constant 0 : i32
    %c0_i32_0 = arith.constant 0 : i32
    return %c0_i32, %arg1 : i32, i32
  }
  func.func @transform_3(%arg0: i32, %arg1: i32) -> (i32, i32) {
    %c0_i32 = arith.constant 0 : i32
    %c0_i32_0 = arith.constant 0 : i32
    return %arg1, %c0_i32 : i32, i32
  }
  func.func @transform_4(%arg0: i32, %arg1: i32) -> (i32, i32) {
    %c0_i32 = arith.constant 0 : i32
    %c0_i32_0 = arith.constant 0 : i32
    %c0_i32_1 = arith.constant 0 : i32
    return %c0_i32, %c0_i32_0 : i32, i32
  }
  func.func @transform_5(%arg0: i32, %arg1: i32) -> (i32, i32) {
    %c0_i32 = arith.constant 0 : i32
    %c0_i32_0 = arith.constant 0 : i32
    return %arg0, %c0_i32 : i32, i32
  }
}

</mosaic_0001>

<llo_original>
// kernel: tpu_custom_call.1
$region0: #{tpu_custom_call.1}
  #allocation0 [shape = 'u32[]', space=smem, size = 0x4, offset = 0x4, fixed_abs, tag = 'smem constant byte address 0x4 - core index']
  #allocation1 [shape = 'u32[144,128]{1,0:T(1,128)}', space=vmem, size = 0x12000, scoped, tag = 'internal scratch']
  #allocation2 [shape = 'f32[8,128]{1,0:T(8,128)}', space=vmem, size = 0x1000, scoped, tag = 'scratch operand']
  %s0 = inlined_call_operand.hbm [shape: f32[16,128], index: 0, kind: input, shape index: {}]
  %s1 = inlined_call_operand.hbm [shape: bf16[128,512], index: 1, kind: input, shape index: {}]
  %s2 = inlined_call_operand.vmem [shape: f32[1,512], index: 2, kind: input, shape index: {}]
  %s3 = inlined_call_operand.hbm [shape: bf16[512,128], index: 3, kind: input, shape index: {}]
  %s4 = inlined_call_operand.vmem [shape: f32[1,128], index: 4, kind: input, shape index: {}]
  %s5 = inlined_call_operand.hbm [shape: f32[16,128], index: 5, kind: output, shape index: {}]
  %s6 = sld [smem:[#allocation0]]
  $region73: #{tpu_custom_call.1} parent=0
    _
  %s8 = ssub.s32 1, %s6
  %s9 = scalar_select 0, %s8, %s6
  $region1: #{tpu_custom_call.1} parent=0
    #allocation3 [shape = 'u8[8192]{0}', space=vmem, size = 0x2000, scoped, tag = 'input window, operand 0']
    #allocation4 [shape = 's32[2]{0}', space=sflag, size = 0x8, scoped, tag = 'scoped memory for tpu_custom_call.1']
    #allocation5 [shape = 's32[2]{0}', space=sflag, size = 0x8, scoped, tag = 'scoped memory for tpu_custom_call.1']
    #allocation6 [shape = 'u8[131072]{0}', space=vmem, size = 0x20000, scoped, tag = 'input window, operand 1, single buffered']
    #allocation7 [shape = 's32[1]{0}', space=sflag, size = 0x4, scoped, tag = 'scoped memory for tpu_custom_call.1']
    #allocation8 [shape = 'u8[131072]{0}', space=vmem, size = 0x20000, scoped, tag = 'input window, operand 3, single buffered']
    #allocation9 [shape = 'u8[8192]{0}', space=vmem, size = 0x2000, scoped, tag = 'output window, operand 0']
    %10 = vsyncpa [#allocation4], 0
    %s11 = scalar_lea.sflag [#allocation4], 1
    %12 = vsyncpa %s11, 0
    %13 = vsyncpa [#allocation7], 0
    %14 = vsyncpa [#allocation5], 0
    %s15 = scalar_lea.sflag [#allocation5], 1
    %16 = vsyncpa %s15, 0
    loop: start=0, step=1, limit=4
    $region2: #{tpu_custom_call.1} parent=1 // loop_pre_header
      _
    $region3: #{tpu_custom_call.1} parent=1 // loop_header
      %s18 = sphi 0, %s22
      %p19 = scmp.ge.s32.totalorder %s18, 4
      %s25 = sphi 0, %s37
      %s26 = sphi 0, %s33
      %s27 = sphi 0, %s25
      %s28 = sphi 0, %s26
      %s29 = sphi 0, %s27
      %s30 = sphi 0, %s28
      %s40 = sphi 0, %s42
      %s43 = sphi 0, %s40
      %s44 = sphi 0, %s43
      %s60 = sphi 0, %s44
      %s66 = sphi 0, %s68
      %s69 = sphi 0, %s66
      %s70 = sphi 0, %s69
      %s86 = sphi 0, %s70
      %s92 = sphi 0, %s94
      %s95 = sphi 0, %s92
      %s96 = sphi 0, %s95
      %s112 = sphi 0, %s96
      %s118 = sphi 0, %s120
      %s121 = sphi 0, %s118
      %s122 = sphi 0, %s121
      %s138 = sphi 0, %s122
      %s142 = sphi 0, %s142
      %s144 = sphi 0, %s142
      %s145 = sphi 0, %s144
      %s159 = sphi 0, %s145
      %s165 = sphi 0, %s167
      %s168 = sphi 0, %s165
      %s169 = sphi 0, %s168
      %s185 = sphi 0, %s169
    $region4: #{tpu_custom_call.1} parent=1 // loop_header_branch
      %21 = sbr.rel (%p19) target = $region8
    $region5: #{tpu_custom_call.1} parent=1 // loop_body
      %s23 = ssub.s32 %s18, 1
      %s24 = ssub.s32 %s18, 2
      %s31 = sadd.s32 1, %s26
      %p32 = scmp.ge.s32.totalorder %s31, 1
      %s33 = scalar_select %p32, 0, %s31
      %s34 = sadd.s32 1, %s25
      %s35 = scalar_select %p32, %s34, %s25
      %p36 = scmp.ge.s32.totalorder %s35, 2
      %s37 = scalar_select %p36, 0, %s35
      %s38 = ssub.s32 %s25, %s37
      %p39 = scmp.eq.s32.totalorder %s38, 0
      %s41 = sadd.s32 %s40, 1
      %s42 = scalar_select %p39, %s40, %s41
      %p45 = pneg %p39
      %p46 = scmp.eq.s32.totalorder %s18, 1
      %p47 = por %p45, %p46
      %p48 = scmp.ne.s32.totalorder %s40, %s43
      %p49 = scmp.eq.s32.totalorder %s18, 0
      %p50 = por %p48, %p49
      %p51 = scmp.ne.s32.totalorder %s40, %s43
      %p52 = scmp.eq.s32.totalorder %s23, 1
      %p53 = por %p51, %p52
      %p54 = scmp.ne.s32.totalorder %s43, %s44
      %p55 = scmp.eq.s32.totalorder %s23, 0
      %p56 = por %p54, %p55
      %p57 = scmp.ne.s32.totalorder %s43, %s44
      %p58 = scmp.eq.s32.totalorder %s24, 1
      %p59 = por %p57, %p58
      %p61 = scmp.ne.s32.totalorder %s44, %s60
      %p62 = scmp.eq.s32.totalorder %s24, 0
      %p63 = por %p61, %p62
      %s64 = ssub.s32 %s26, %s33
      %p65 = scmp.eq.s32.totalorder %s64, 0
      %s67 = sadd.s32 %s66, 1
      %s68 = scalar_select %p65, %s66, %s67
      %p71 = pneg %p65
      %p72 = scmp.eq.s32.totalorder %s18, 1
      %p73 = por %p71, %p72
      %p74 = scmp.ne.s32.totalorder %s66, %s69
      %p75 = scmp.eq.s32.totalorder %s18, 0
      %p76 = por %p74, %p75
      %p77 = scmp.ne.s32.totalorder %s66, %s69
      %p78 = scmp.eq.s32.totalorder %s23, 1
      %p79 = por %p77, %p78
      %p80 = scmp.ne.s32.totalorder %s69, %s70
      %p81 = scmp.eq.s32.totalorder %s23, 0
      %p82 = por %p80, %p81
      %p83 = scmp.ne.s32.totalorder %s69, %s70
      %p84 = scmp.eq.s32.totalorder %s24, 1
      %p85 = por %p83, %p84
      %p87 = scmp.ne.s32.totalorder %s70, %s86
      %p88 = scmp.eq.s32.totalorder %s24, 0
      %p89 = por %p87, %p88
      %s90 = ssub.s32 %s26, %s33
      %p91 = scmp.eq.s32.totalorder %s90, 0
      %s93 = sadd.s32 %s92, 1
      %s94 = scalar_select %p91, %s92, %s93
      %p97 = pneg %p91
      %p98 = scmp.eq.s32.totalorder %s18, 1
      %p99 = por %p97, %p98
      %p100 = scmp.ne.s32.totalorder %s92, %s95
      %p101 = scmp.eq.s32.totalorder %s18, 0
      %p102 = por %p100, %p101
      %p103 = scmp.ne.s32.totalorder %s92, %s95
      %p104 = scmp.eq.s32.totalorder %s23, 1
      %p105 = por %p103, %p104
      %p106 = scmp.ne.s32.totalorder %s95, %s96
      %p107 = scmp.eq.s32.totalorder %s23, 0
      %p108 = por %p106, %p107
      %p109 = scmp.ne.s32.totalorder %s95, %s96
      %p110 = scmp.eq.s32.totalorder %s24, 1
      %p111 = por %p109, %p110
      %p113 = scmp.ne.s32.totalorder %s96, %s112
      %p114 = scmp.eq.s32.totalorder %s24, 0
      %p115 = por %p113, %p114
      %s116 = ssub.s32 %s26, %s33
      %p117 = scmp.eq.s32.totalorder %s116, 0
      %s119 = sadd.s32 %s118, 1
      %s120 = scalar_select %p117, %s118, %s119
      %p123 = pneg %p117
      %p124 = scmp.eq.s32.totalorder %s18, 1
      %p125 = por %p123, %p124
      %p126 = scmp.ne.s32.totalorder %s118, %s121
      %p127 = scmp.eq.s32.totalorder %s18, 0
      %p128 = por %p126, %p127
      %p129 = scmp.ne.s32.totalorder %s118, %s121
      %p130 = scmp.eq.s32.totalorder %s23, 1
      %p131 = por %p129, %p130
      %p132 = scmp.ne.s32.totalorder %s121, %s122
      %p133 = scmp.eq.s32.totalorder %s23, 0
      %p134 = por %p132, %p133
      %p135 = scmp.ne.s32.totalorder %s121, %s122
      %p136 = scmp.eq.s32.totalorder %s24, 1
      %p137 = por %p135, %p136
      %p139 = scmp.ne.s32.totalorder %s122, %s138
      %p140 = scmp.eq.s32.totalorder %s24, 0
      %p141 = por %p139, %p140
      %s143 = sadd.s32 %s142, 1
      %p146 = scmp.eq.s32.totalorder %s18, 1
      %p147 = scmp.ne.s32.totalorder %s142, %s144
      %p148 = scmp.eq.s32.totalorder %s18, 0
      %p149 = por %p147, %p148
      %p150 = scmp.ne.s32.totalorder %s142, %s144
      %p151 = scmp.eq.s32.totalorder %s23, 1
      %p152 = por %p150, %p151
      %p153 = scmp.ne.s32.totalorder %s144, %s145
      %p154 = scmp.eq.s32.totalorder %s23, 0
      %p155 = por %p153, %p154
      %p156 = scmp.ne.s32.totalorder %s144, %s145
      %p157 = scmp.eq.s32.totalorder %s24, 1
      %p158 = por %p156, %p157
      %p160 = scmp.ne.s32.totalorder %s145, %s159
      %p161 = scmp.eq.s32.totalorder %s24, 0
      %p162 = por %p160, %p161
      %s163 = ssub.s32 %s25, %s37
      %p164 = scmp.eq.s32.totalorder %s163, 0
      %s166 = sadd.s32 %s165, 1
      %s167 = scalar_select %p164, %s165, %s166
      %p170 = pneg %p164
      %p171 = scmp.eq.s32.totalorder %s18, 1
      %p172 = por %p170, %p171
      %p173 = scmp.ne.s32.totalorder %s165, %s168
      %p174 = scmp.eq.s32.totalorder %s18, 0
      %p175 = por %p173, %p174
      %p176 = scmp.ne.s32.totalorder %s165, %s168
      %p177 = scmp.eq.s32.totalorder %s23, 1
      %p178 = por %p176, %p177
      %p179 = scmp.ne.s32.totalorder %s168, %s169
      %p180 = scmp.eq.s32.totalorder %s23, 0
      %p181 = por %p179, %p180
      %p182 = scmp.ne.s32.totalorder %s168, %s169
      %p183 = scmp.eq.s32.totalorder %s24, 1
      %p184 = por %p182, %p183
      %p186 = scmp.ne.s32.totalorder %s169, %s185
      %p187 = scmp.eq.s32.totalorder %s24, 0
      %p188 = por %p186, %p187
      %p189 = scmp.le.s32.totalorder 1, %s18
      %p190 = scmp.lt.s32.totalorder %s18, 3
      %p191 = pnand %p189, %p190
      %p192 = pneg %p191
      // Predicated region
      $region9: #{tpu_custom_call.1} parent=5 // pred_check
        _
      $region10: #{tpu_custom_call.1} parent=5 // pred_check_branch
        %194 = sbr.rel (%p191) target = $region12
      $region11: #{tpu_custom_call.1} parent=5 // pred_region
        %s195 = ssub.s32 %s18, 1
        // Predicated region
        $region13: #{tpu_custom_call.1} parent=11 // pred_check
          %p196 = pneg %p82
        $region14: #{tpu_custom_call.1} parent=11 // pred_check_branch
          %198 = sbr.rel (%p196) target = $region16
        $region15: #{tpu_custom_call.1} parent=11 // pred_region
          %s199 = smul.u32 4, %s28
          %s201 = ssub.s32 4096, 4096
          %202 = vsyncadd [#allocation7], %s201
          %s203 = smul.addr %s199, 64
          %s204 = scalar_lea.hbm %s1, %s203
          %s205 = sshll.u32 [#allocation6], 4
          %s206 = int_to_ptr.vmem [resolvable:$true] %s205
          %211 = dma.hbm_to_vmem [thread:$0]  %s204, 4096, %s206, [#allocation7], 256, 256, 16
        $region16: #{tpu_custom_call.1} parent=11 // pred_fallthru
          _
        // Predicated region
        $region17: #{tpu_custom_call.1} parent=11 // pred_check
          %p212 = pneg %p108
        $region18: #{tpu_custom_call.1} parent=11 // pred_check_branch
          %214 = sbr.rel (%p212) target = $region20
        $region19: #{tpu_custom_call.1} parent=11 // pred_region
          %s215 = smul.u32 4, %s28
          %p216 = scmp.lt.s32.totalorder %s215, 3
          %s217 = scalar_select %p216, %s215, 3
          %s218 = scalar_lea.vmem %s2, %s217
          %s219 = smul.u32 4, %s28
        $region20: #{tpu_custom_call.1} parent=11 // pred_fallthru
          _
        // Predicated region
        $region21: #{tpu_custom_call.1} parent=11 // pred_check
          %p220 = pneg %p134
        $region22: #{tpu_custom_call.1} parent=11 // pred_check_branch
          %222 = sbr.rel (%p220) target = $region24
        $region23: #{tpu_custom_call.1} parent=11 // pred_region
          %s223 = smul.u32 64, %s28
          %s225 = ssub.s32 4096, 4096
          %226 = vsyncadd [#allocation7], %s225
          %s227 = smul.addr %s223, 64
          %s228 = scalar_lea.hbm %s3, %s227
          %s229 = sshll.u32 [#allocation8], 4
          %s230 = int_to_ptr.vmem [resolvable:$true] %s229
          %235 = dma.hbm_to_vmem [thread:$0]  %s228, 4096, %s230, [#allocation7], 64, 64, 4
        $region24: #{tpu_custom_call.1} parent=11 // pred_fallthru
          _
        // Predicated region
        $region25: #{tpu_custom_call.1} parent=11 // pred_check
          %p236 = pneg %p155
        $region26: #{tpu_custom_call.1} parent=11 // pred_check_branch
          %238 = sbr.rel (%p236) target = $region28
        $region27: #{tpu_custom_call.1} parent=11 // pred_region
          _
        $region28: #{tpu_custom_call.1} parent=11 // pred_fallthru
          _
      $region12: #{tpu_custom_call.1} parent=5 // pred_fallthru
        _
      %p239 = scmp.lt.s32.totalorder %s18, 2
      // Predicated region
      $region29: #{tpu_custom_call.1} parent=5 // pred_check
        %p240 = pneg %p239
      $region30: #{tpu_custom_call.1} parent=5 // pred_check_branch
        %242 = sbr.rel (%p240) target = $region32
      $region31: #{tpu_custom_call.1} parent=5 // pred_region
        // Predicated region
        $region33: #{tpu_custom_call.1} parent=31 // pred_check
          %p243 = pneg %p50
        $region34: #{tpu_custom_call.1} parent=31 // pred_check_branch
          %245 = sbr.rel (%p243) target = $region36
        $region35: #{tpu_custom_call.1} parent=31 // pred_region
          %s246 = sand.u32 %s40, 1
          %s247 = scalar_lea.sflag [#allocation4], %s246
          %s248 = sand.u32 %s40, 1
          %s249 = smul.addr %s248, 8
          %s250 = scalar_lea.vmem [#allocation3], %s249
          %s252 = ssub.s32 128, 128
          %253 = vsyncadd %s247, %s252
          %s254 = smul.addr %s25, 128
          %s255 = scalar_lea.hbm %s0, %s254
          %s257 = sshll.u32 %s250, 4
          %s258 = int_to_ptr.vmem [resolvable:$true] %s257
          %260 = dma.hbm_to_vmem [thread:$0]  %s255, 128, %s258, %s247
        $region36: #{tpu_custom_call.1} parent=31 // pred_fallthru
          _
      $region32: #{tpu_custom_call.1} parent=5 // pred_fallthru
        _
      %p261 = scmp.le.s32.totalorder 1, %s18
      %p262 = scmp.lt.s32.totalorder %s18, 3
      %p263 = pnand %p261, %p262
      %p264 = pneg %p263
      // Predicated region
      $region37: #{tpu_custom_call.1} parent=5 // pred_check
        _
      $region38: #{tpu_custom_call.1} parent=5 // pred_check_branch
        %266 = sbr.rel (%p263) target = $region40
      $region39: #{tpu_custom_call.1} parent=5 // pred_region
        %s267 = ssub.s32 %s18, 1
        %s268 = sand.u32 %s43, 1
        %s269 = scalar_lea.sflag [#allocation4], %s268
        %s270 = sand.u32 %s43, 1
        %s271 = smul.addr %s270, 8
        %s272 = scalar_lea.vmem [#allocation3], %s271
        // Predicated region
        $region41: #{tpu_custom_call.1} parent=39 // pred_check
          %p273 = pneg %p56
        $region42: #{tpu_custom_call.1} parent=39 // pred_check_branch
          %275 = sbr.rel (%p273) target = $region44
        $region43: #{tpu_custom_call.1} parent=39 // pred_region
          %276 = dma.done %s269, 128
        $region44: #{tpu_custom_call.1} parent=39 // pred_fallthru
          _
        // Predicated region
        $region45: #{tpu_custom_call.1} parent=39 // pred_check
          %p277 = pneg %p82
        $region46: #{tpu_custom_call.1} parent=39 // pred_check_branch
          %279 = sbr.rel (%p277) target = $region48
        $region47: #{tpu_custom_call.1} parent=39 // pred_region
          %280 = dma.done [#allocation7], 4096
        $region48: #{tpu_custom_call.1} parent=39 // pred_fallthru
          _
        // Predicated region
        $region49: #{tpu_custom_call.1} parent=39 // pred_check
          %p281 = pneg %p134
        $region50: #{tpu_custom_call.1} parent=39 // pred_check_branch
          %283 = sbr.rel (%p281) target = $region52
        $region51: #{tpu_custom_call.1} parent=39 // pred_region
          %284 = dma.done [#allocation7], 4096
        $region52: #{tpu_custom_call.1} parent=39 // pred_fallthru
          _
        %s285 = sand.u32 %s43, 1
        %s286 = scalar_lea.sflag [#allocation4], %s285
        %s287 = sand.u32 %s43, 1
        %s288 = smul.addr %s287, 8
        %s289 = scalar_lea.vmem [#allocation3], %s288
        %p290 = pneg %p56
        %p291 = pneg %p53
        %p292 = pneg %p82
        %p293 = pneg %p79
        %s294 = smul.u32 4, %s28
        %p295 = scmp.lt.s32.totalorder %s294, 3
        %s296 = scalar_select %p295, %s294, 3
        %s297 = scalar_lea.vmem %s2, %s296
        %p298 = pneg %p108
        %p299 = pneg %p105
        %p300 = pneg %p134
        %p301 = pneg %p131
        %p302 = pneg %p155
        %p303 = pneg %p152
        %p304 = pneg %p181
        %p305 = pneg %p178
        %s306 = sand.u32 %s168, 1
        %s307 = scalar_lea.sflag [#allocation5], %s306
        %s308 = sand.u32 %s168, 1
        %s309 = smul.addr %s308, 8
        %s310 = scalar_lea.vmem [#allocation9], %s309
        %s311 = smul.u32 4, %s28
        %s312 = smul.u32 4, %s28
        %p313 = scmp.lt.s32.totalorder %s312, 3
        %s314 = scalar_select %p313, %s312, 3
        %s315 = scalar_lea.vmem %s2, %s314
        %s316 = smul.u32 4, %s28
        %s317 = smul.u32 64, %s28
        %p319 = scmp.eq.s32.totalorder %s28, 0
        // Predicated region
        $region53: #{tpu_custom_call.1} parent=39 // pred_check
          %p320 = pneg %p319
        $region54: #{tpu_custom_call.1} parent=39 // pred_check_branch
          %322 = sbr.rel (%p320) target = $region56
        $region55: #{tpu_custom_call.1} parent=39 // pred_region
          %323 = vst [vmem:[#allocation2] sm:$0xff] 0.0
        $region56: #{tpu_custom_call.1} parent=39 // pred_fallthru
          _
        %v324 = vld [vmem:[%s272] sm:$0xff]
        %v325 = vpack.c.bf16 %v324, %v324
        %v326 = vld [vmem:[#allocation6] sm:$0xff]
        %v327 = vld [vmem:[#allocation6 + $0x8] sm:$0xff]
        %v328 = vld [vmem:[#allocation6 + $0x10] sm:$0xff]
        %v329 = vld [vmem:[#allocation6 + $0x18] sm:$0xff]
        %v330 = vld [vmem:[#allocation6 + $0x20] sm:$0xff]
        %v331 = vld [vmem:[#allocation6 + $0x28] sm:$0xff]
        %v332 = vld [vmem:[#allocation6 + $0x30] sm:$0xff]
        %v333 = vld [vmem:[#allocation6 + $0x38] sm:$0xff]
        %v334 = vld [vmem:[#allocation6 + $0x40] sm:$0xff]
        %v335 = vld [vmem:[#allocation6 + $0x48] sm:$0xff]
        %v336 = vld [vmem:[#allocation6 + $0x50] sm:$0xff]
        %v337 = vld [vmem:[#allocation6 + $0x58] sm:$0xff]
        %v338 = vld [vmem:[#allocation6 + $0x60] sm:$0xff]
        %v339 = vld [vmem:[#allocation6 + $0x68] sm:$0xff]
        %v340 = vld [vmem:[#allocation6 + $0x70] sm:$0xff]
        %v341 = vld [vmem:[#allocation6 + $0x78] sm:$0xff]
        %v342 = vld [vmem:[#allocation6 + $0x80] sm:$0xff]
        %v343 = vld [vmem:[#allocation6 + $0x88] sm:$0xff]
        %v344 = vld [vmem:[#allocation6 + $0x90] sm:$0xff]
        %v345 = vld [vmem:[#allocation6 + $0x98] sm:$0xff]
        %v346 = vld [vmem:[#allocation6 + $0xa0] sm:$0xff]
        %v347 = vld [vmem:[#allocation6 + $0xa8] sm:$0xff]
        %v348 = vld [vmem:[#allocation6 + $0xb0] sm:$0xff]
        %v349 = vld [vmem:[#allocation6 + $0xb8] sm:$0xff]
        %v350 = vld [vmem:[#allocation6 + $0xc0] sm:$0xff]
        %v351 = vld [vmem:[#allocation6 + $0xc8] sm:$0xff]
        %v352 = vld [vmem:[#allocation6 + $0xd0] sm:$0xff]
        %v353 = vld [vmem:[#allocation6 + $0xd8] sm:$0xff]
        %v354 = vld [vmem:[#allocation6 + $0xe0] sm:$0xff]
        %v355 = vld [vmem:[#allocation6 + $0xe8] sm:$0xff]
        %v356 = vld [vmem:[#allocation6 + $0xf0] sm:$0xff]
        %v357 = vld [vmem:[#allocation6 + $0xf8] sm:$0xff]
        %v358 = vld [vmem:[%s315] sm:$0xf]
        %v360 = vlaneseq
        %v361 = vshrl.u32 %v360, 7
        %v362 = vsub.s32 0, %v361
        %v363 = vrot.slane %v358, %v362
        %v364 = vlaneseq
        %v365 = vshrl.u32 %v364, 7
        %v366 = vsub.s32 1, %v365
        %v367 = vrot.slane %v358, %v366
        %v368 = vlaneseq
        %v369 = vshrl.u32 %v368, 7
        %v370 = vsub.s32 2, %v369
        %v371 = vrot.slane %v358, %v370
        %v372 = vlaneseq
        %v373 = vshrl.u32 %v372, 7
        %v374 = vsub.s32 3, %v373
        %v375 = vrot.slane %v358, %v374
        %v412 = vunpack.c.l.b16 %v326
        %v413 = vunpack.c.h.b16 %v326
        %v414 = vunpack.c.l.b16 %v327
        %v415 = vunpack.c.h.b16 %v327
        %v416 = vunpack.c.l.b16 %v328
        %v417 = vunpack.c.h.b16 %v328
        %v418 = vunpack.c.l.b16 %v329
        %v419 = vunpack.c.h.b16 %v329
        %v420 = vunpack.c.l.b16 %v330
        %v421 = vunpack.c.h.b16 %v330
        %v422 = vunpack.c.l.b16 %v331
        %v423 = vunpack.c.h.b16 %v331
        %v424 = vunpack.c.l.b16 %v332
        %v425 = vunpack.c.h.b16 %v332
        %v426 = vunpack.c.l.b16 %v333
        %v427 = vunpack.c.h.b16 %v333
        %v428 = vunpack.c.l.b16 %v334
        %v429 = vunpack.c.h.b16 %v334
        %v430 = vunpack.c.l.b16 %v335
        %v431 = vunpack.c.h.b16 %v335
        %v432 = vunpack.c.l.b16 %v336
        %v433 = vunpack.c.h.b16 %v336
        %v434 = vunpack.c.l.b16 %v337
        %v435 = vunpack.c.h.b16 %v337
        %v436 = vunpack.c.l.b16 %v338
        %v437 = vunpack.c.h.b16 %v338
        %v438 = vunpack.c.l.b16 %v339
        %v439 = vunpack.c.h.b16 %v339
        %v440 = vunpack.c.l.b16 %v340
        %v441 = vunpack.c.h.b16 %v340
        %v442 = vunpack.c.l.b16 %v341
        %v443 = vunpack.c.h.b16 %v341
        %v444 = vunpack.c.l.b16 %v342
        %v445 = vunpack.c.h.b16 %v342
        %v446 = vunpack.c.l.b16 %v343
        %v447 = vunpack.c.h.b16 %v343
        %v448 = vunpack.c.l.b16 %v344
        %v449 = vunpack.c.h.b16 %v344
        %v450 = vunpack.c.l.b16 %v345
        %v451 = vunpack.c.h.b16 %v345
        %v452 = vunpack.c.l.b16 %v346
        %v453 = vunpack.c.h.b16 %v346
        %v454 = vunpack.c.l.b16 %v347
        %v455 = vunpack.c.h.b16 %v347
        %v456 = vunpack.c.l.b16 %v348
        %v457 = vunpack.c.h.b16 %v348
        %v458 = vunpack.c.l.b16 %v349
        %v459 = vunpack.c.h.b16 %v349
        %v460 = vunpack.c.l.b16 %v350
        %v461 = vunpack.c.h.b16 %v350
        %v462 = vunpack.c.l.b16 %v351
        %v463 = vunpack.c.h.b16 %v351
        %v464 = vunpack.c.l.b16 %v352
        %v465 = vunpack.c.h.b16 %v352
        %v466 = vunpack.c.l.b16 %v353
        %v467 = vunpack.c.h.b16 %v353
        %v468 = vunpack.c.l.b16 %v354
        %v469 = vunpack.c.h.b16 %v354
        %v470 = vunpack.c.l.b16 %v355
        %v471 = vunpack.c.h.b16 %v355
        %v472 = vunpack.c.l.b16 %v356
        %v473 = vunpack.c.h.b16 %v356
        %v474 = vunpack.c.l.b16 %v357
        %v475 = vunpack.c.h.b16 %v357
        %v476 = vpack.c.b16 %v416, %v412
        %v477 = vpack.c.b16 %v417, %v413
        %v478 = vpack.c.b16 %v418, %v414
        %v479 = vpack.c.b16 %v419, %v415
        %v480 = vpack.c.b16 %v424, %v420
        %v481 = vpack.c.b16 %v425, %v421
        %v482 = vpack.c.b16 %v426, %v422
        %v483 = vpack.c.b16 %v427, %v423
        %v484 = vpack.c.b16 %v432, %v428
        %v485 = vpack.c.b16 %v433, %v429
        %v486 = vpack.c.b16 %v434, %v430
        %v487 = vpack.c.b16 %v435, %v431
        %v488 = vpack.c.b16 %v440, %v436
        %v489 = vpack.c.b16 %v441, %v437
        %v490 = vpack.c.b16 %v442, %v438
        %v491 = vpack.c.b16 %v443, %v439
        %v492 = vpack.c.b16 %v448, %v444
        %v493 = vpack.c.b16 %v449, %v445
        %v494 = vpack.c.b16 %v450, %v446
        %v495 = vpack.c.b16 %v451, %v447
        %v496 = vpack.c.b16 %v456, %v452
        %v497 = vpack.c.b16 %v457, %v453
        %v498 = vpack.c.b16 %v458, %v454
        %v499 = vpack.c.b16 %v459, %v455
        %v500 = vpack.c.b16 %v464, %v460
        %v501 = vpack.c.b16 %v465, %v461
        %v502 = vpack.c.b16 %v466, %v462
        %v503 = vpack.c.b16 %v467, %v463
        %v504 = vpack.c.b16 %v472, %v468
        %v505 = vpack.c.b16 %v473, %v469
        %v506 = vpack.c.b16 %v474, %v470
        %v507 = vpack.c.b16 %v475, %v471
        %540 = vmatprep.subr.bf16.mxu0 %v477
        %541 = vmatpush1.bf16.msra.mxu0 %v476
        %542 = vmatprep.subr.bf16.mxu0 %v481
        %543 = vmatpush1.bf16.msra.mxu0 %v480
        %544 = vmatprep.subr.bf16.mxu0 %v485
        %545 = vmatpush1.bf16.msra.mxu0 %v484
        %546 = vmatprep.subr.bf16.mxu0 %v489
        %547 = vmatpush1.bf16.msra.mxu0 %v488
        %548 = vmatprep.subr.bf16.mxu0 %v493
        %549 = vmatpush1.bf16.msra.mxu0 %v492
        %550 = vmatprep.subr.bf16.mxu0 %v497
        %551 = vmatpush1.bf16.msra.mxu0 %v496
        %552 = vmatprep.subr.bf16.mxu0 %v501
        %553 = vmatpush1.bf16.msra.mxu0 %v500
        %554 = vmatprep.subr.bf16.mxu0 %v505
        %555 = vmatpush1.bf16.msra.mxu0 %v504
        %556 = vmatprep.subr.bf16.mxu0 0
        %557 = vmatpush1.bf16.msra.mxu0 0
        %558 = vmatprep.subr.bf16.mxu0 0
        %559 = vmatpush1.bf16.msra.mxu0 0
        %560 = vmatprep.subr.bf16.mxu0 0
        %561 = vmatpush1.bf16.msra.mxu0 0
        %562 = vmatprep.subr.bf16.mxu0 0
        %563 = vmatpush1.bf16.msra.mxu0 0
        %564 = vmatprep.subr.bf16.mxu0 0
        %565 = vmatpush1.bf16.msra.mxu0 0
        %566 = vmatprep.subr.bf16.mxu0 0
        %567 = vmatpush1.bf16.msra.mxu0 0
        %568 = vmatprep.subr.bf16.mxu0 0
        %569 = vmatpush1.bf16.msra.mxu0 0
        %570 = vmatprep.subr.bf16.mxu0 0
        %571 = vmatpush1.bf16.msra.mxu0 0
        %572 = vmatprep.mubr.bf16.mxu0 0
        %573 = vmatmul.mubr.bf16.gmra.mrb[0].mxu0 %v325
        %v574 = vpop.f32.mrb[0].mxu0
        %v575 = vadd.f32 %v363, %v574
        %v576 = vpop.f32.mrb[0].mxu0
        %v577 = vadd.f32 %v367, %v576
        %v578 = vpop.f32.mrb[0].mxu0
        %v579 = vpop.f32.mrb[0].mxu0
        %580 = vdwg.mxu0
        %581 = vmatprep.subr.bf16.mxu0 %v479
        %582 = vmatpush1.bf16.msra.mxu0 %v478
        %583 = vmatprep.subr.bf16.mxu0 %v483
        %584 = vmatpush1.bf16.msra.mxu0 %v482
        %585 = vmatprep.subr.bf16.mxu0 %v487
        %586 = vmatpush1.bf16.msra.mxu0 %v486
        %587 = vmatprep.subr.bf16.mxu0 %v491
        %588 = vmatpush1.bf16.msra.mxu0 %v490
        %589 = vmatprep.subr.bf16.mxu0 %v495
        %590 = vmatpush1.bf16.msra.mxu0 %v494
        %591 = vmatprep.subr.bf16.mxu0 %v499
        %592 = vmatpush1.bf16.msra.mxu0 %v498
        %593 = vmatprep.subr.bf16.mxu0 %v503
        %594 = vmatpush1.bf16.msra.mxu0 %v502
        %595 = vmatprep.subr.bf16.mxu0 %v507
        %596 = vmatpush1.bf16.msra.mxu0 %v506
        %597 = vmatprep.subr.bf16.mxu0 0
        %598 = vmatpush1.bf16.msra.mxu0 0
        %599 = vmatprep.subr.bf16.mxu0 0
        %600 = vmatpush1.bf16.msra.mxu0 0
        %601 = vmatprep.subr.bf16.mxu0 0
        %602 = vmatpush1.bf16.msra.mxu0 0
        %603 = vmatprep.subr.bf16.mxu0 0
        %604 = vmatpush1.bf16.msra.mxu0 0
        %605 = vmatprep.subr.bf16.mxu0 0
        %606 = vmatpush1.bf16.msra.mxu0 0
        %607 = vmatprep.subr.bf16.mxu0 0
        %608 = vmatpush1.bf16.msra.mxu0 0
        %609 = vmatprep.subr.bf16.mxu0 0
        %610 = vmatpush1.bf16.msra.mxu0 0
        %611 = vmatprep.subr.bf16.mxu0 0
        %612 = vmatpush1.bf16.msra.mxu0 0
        %613 = vmatprep.mubr.bf16.mxu0 0
        %614 = vmatmul.mubr.bf16.gmra.mrb[0].mxu0 %v325
        %v615 = vpop.f32.mrb[0].mxu0
        %v616 = vadd.f32 %v371, %v615
        %v617 = vpop.f32.mrb[0].mxu0
        %v618 = vadd.f32 %v375, %v617
        %v619 = vpop.f32.mrb[0].mxu0
        %v620 = vpop.f32.mrb[0].mxu0
        %621 = vdwg.mxu0
        %v622 = vmul.f32 %v575, %v575
        %v623 = vmul.f32 %v577, %v577
        %v624 = vmul.f32 %v616, %v616
        %v625 = vmul.f32 %v618, %v618
        %v626 = vmul.f32 %v622, %v575
        %v627 = vmul.f32 %v623, %v577
        %v628 = vmul.f32 %v624, %v616
        %v629 = vmul.f32 %v625, %v618
        %v630 = vmul.f32 %v626, 0.044715
        %v631 = vmul.f32 %v627, 0.044715
        %v632 = vmul.f32 %v628, 0.044715
        %v633 = vmul.f32 %v629, 0.044715
        %v634 = vadd.f32 %v575, %v630
        %v635 = vadd.f32 %v577, %v631
        %v636 = vadd.f32 %v616, %v632
        %v637 = vadd.f32 %v618, %v633
        %v638 = vmul.f32 %v634, 0.7978846
        %v639 = vmul.f32 %v635, 0.7978846
        %v640 = vmul.f32 %v636, 0.7978846
        %v641 = vmul.f32 %v637, 0.7978846
        %v642 = vmul.f32 %v575, 0.5
        %v643 = vmul.f32 %v577, 0.5
        %v644 = vmul.f32 %v616, 0.5
        %v645 = vmul.f32 %v618, 0.5
        %v646 = vtanh.pop %v638
        %v647 = vtanh.pop %v639
        %v648 = vtanh.pop %v640
        %v649 = vtanh.pop %v641
        %v650 = vadd.f32 %v646, 1.0
        %v651 = vadd.f32 %v647, 1.0
        %v652 = vadd.f32 %v648, 1.0
        %v653 = vadd.f32 %v649, 1.0
        %v654 = vmul.f32 %v642, %v650
        %v655 = vmul.f32 %v643, %v651
        %v656 = vmul.f32 %v644, %v652
        %v657 = vmul.f32 %v645, %v653
        %v658 = vld [vmem:[#allocation2] sm:$0xff]
        %v659 = vpack.c.bf16 %v654, %v654
        %v660 = vpack.c.bf16 %v655, %v655
        %v661 = vpack.c.bf16 %v656, %v656
        %v662 = vpack.c.bf16 %v657, %v657
        %v663 = vld [vmem:[#allocation8] sm:$0xf]
        %v664 = vld [vmem:[#allocation8 + $0x4] sm:$0xf]
        %v665 = vld [vmem:[#allocation8 + $0x8] sm:$0xf]
        %v666 = vld [vmem:[#allocation8 + $0xc] sm:$0xf]
        %v667 = vld [vmem:[#allocation8 + $0x10] sm:$0xf]
        %v668 = vld [vmem:[#allocation8 + $0x14] sm:$0xf]
        %v669 = vld [vmem:[#allocation8 + $0x18] sm:$0xf]
        %v670 = vld [vmem:[#allocation8 + $0x1c] sm:$0xf]
        %v671 = vld [vmem:[#allocation8 + $0x20] sm:$0xf]
        %v672 = vld [vmem:[#allocation8 + $0x24] sm:$0xf]
        %v673 = vld [vmem:[#allocation8 + $0x28] sm:$0xf]
        %v674 = vld [vmem:[#allocation8 + $0x2c] sm:$0xf]
        %v675 = vld [vmem:[#allocation8 + $0x30] sm:$0xf]
        %v676 = vld [vmem:[#allocation8 + $0x34] sm:$0xf]
        %v677 = vld [vmem:[#allocation8 + $0x38] sm:$0xf]
        %v678 = vld [vmem:[#allocation8 + $0x3c] sm:$0xf]
        %v679 = vld [vmem:[#allocation8 + $0x40] sm:$0xf]
        %v680 = vld [vmem:[#allocation8 + $0x44] sm:$0xf]
        %v681 = vld [vmem:[#allocation8 + $0x48] sm:$0xf]
        %v682 = vld [vmem:[#allocation8 + $0x4c] sm:$0xf]
        %v683 = vld [vmem:[#allocation8 + $0x50] sm:$0xf]
        %v684 = vld [vmem:[#allocation8 + $0x54] sm:$0xf]
        %v685 = vld [vmem:[#allocation8 + $0x58] sm:$0xf]
        %v686 = vld [vmem:[#allocation8 + $0x5c] sm:$0xf]
        %v687 = vld [vmem:[#allocation8 + $0x60] sm:$0xf]
        %v688 = vld [vmem:[#allocation8 + $0x64] sm:$0xf]
        %v689 = vld [vmem:[#allocation8 + $0x68] sm:$0xf]
        %v690 = vld [vmem:[#allocation8 + $0x6c] sm:$0xf]
        %v691 = vld [vmem:[#allocation8 + $0x70] sm:$0xf]
        %v692 = vld [vmem:[#allocation8 + $0x74] sm:$0xf]
        %v693 = vld [vmem:[#allocation8 + $0x78] sm:$0xf]
        %v694 = vld [vmem:[#allocation8 + $0x7c] sm:$0xf]
        %v695 = vld [vmem:[#allocation8 + $0x80] sm:$0xf]
        %v696 = vld [vmem:[#allocation8 + $0x84] sm:$0xf]
        %v697 = vld [vmem:[#allocation8 + $0x88] sm:$0xf]
        %v698 = vld [vmem:[#allocation8 + $0x8c] sm:$0xf]
        %v699 = vld [vmem:[#allocation8 + $0x90] sm:$0xf]
        %v700 = vld [vmem:[#allocation8 + $0x94] sm:$0xf]
        %v701 = vld [vmem:[#allocation8 + $0x98] sm:$0xf]
        %v702 = vld [vmem:[#allocation8 + $0x9c] sm:$0xf]
        %v703 = vld [vmem:[#allocation8 + $0xa0] sm:$0xf]
        %v704 = vld [vmem:[#allocation8 + $0xa4] sm:$0xf]
        %v705 = vld [vmem:[#allocation8 + $0xa8] sm:$0xf]
        %v706 = vld [vmem:[#allocation8 + $0xac] sm:$0xf]
        %v707 = vld [vmem:[#allocation8 + $0xb0] sm:$0xf]
        %v708 = vld [vmem:[#allocation8 + $0xb4] sm:$0xf]
        %v709 = vld [vmem:[#allocation8 + $0xb8] sm:$0xf]
        %v710 = vld [vmem:[#allocation8 + $0xbc] sm:$0xf]
        %v711 = vld [vmem:[#allocation8 + $0xc0] sm:$0xf]
        %v712 = vld [vmem:[#allocation8 + $0xc4] sm:$0xf]
        %v713 = vld [vmem:[#allocation8 + $0xc8] sm:$0xf]
        %v714 = vld [vmem:[#allocation8 + $0xcc] sm:$0xf]
        %v715 = vld [vmem:[#allocation8 + $0xd0] sm:$0xf]
        %v716 = vld [vmem:[#allocation8 + $0xd4] sm:$0xf]
        %v717 = vld [vmem:[#allocation8 + $0xd8] sm:$0xf]
        %v718 = vld [vmem:[#allocation8 + $0xdc] sm:$0xf]
        %v719 = vld [vmem:[#allocation8 + $0xe0] sm:$0xf]
        %v720 = vld [vmem:[#allocation8 + $0xe4] sm:$0xf]
        %v721 = vld [vmem:[#allocation8 + $0xe8] sm:$0xf]
        %v722 = vld [vmem:[#allocation8 + $0xec] sm:$0xf]
        %v723 = vld [vmem:[#allocation8 + $0xf0] sm:$0xf]
        %v724 = vld [vmem:[#allocation8 + $0xf4] sm:$0xf]
        %v725 = vld [vmem:[#allocation8 + $0xf8] sm:$0xf]
        %v726 = vld [vmem:[#allocation8 + $0xfc] sm:$0xf]
        %v791 = vunpack.c.l.b16 %v663
        %v792 = vunpack.c.l.b16 %v664
        %v793 = vunpack.c.l.b16 %v665
        %v794 = vunpack.c.l.b16 %v666
        %v795 = vunpack.c.l.b16 %v667
        %v796 = vunpack.c.l.b16 %v668
        %v797 = vunpack.c.l.b16 %v669
        %v798 = vunpack.c.l.b16 %v670
        %v799 = vunpack.c.l.b16 %v671
        %v800 = vunpack.c.l.b16 %v672
        %v801 = vunpack.c.l.b16 %v673
        %v802 = vunpack.c.l.b16 %v674
        %v803 = vunpack.c.l.b16 %v675
        %v804 = vunpack.c.l.b16 %v676
        %v805 = vunpack.c.l.b16 %v677
        %v806 = vunpack.c.l.b16 %v678
        %v807 = vunpack.c.l.b16 %v679
        %v808 = vunpack.c.l.b16 %v680
        %v809 = vunpack.c.l.b16 %v681
        %v810 = vunpack.c.l.b16 %v682
        %v811 = vunpack.c.l.b16 %v683
        %v812 = vunpack.c.l.b16 %v684
        %v813 = vunpack.c.l.b16 %v685
        %v814 = vunpack.c.l.b16 %v686
        %v815 = vunpack.c.l.b16 %v687
        %v816 = vunpack.c.l.b16 %v688
        %v817 = vunpack.c.l.b16 %v689
        %v818 = vunpack.c.l.b16 %v690
        %v819 = vunpack.c.l.b16 %v691
        %v820 = vunpack.c.l.b16 %v692
        %v821 = vunpack.c.l.b16 %v693
        %v822 = vunpack.c.l.b16 %v694
        %v823 = vunpack.c.l.b16 %v695
        %v824 = vunpack.c.l.b16 %v696
        %v825 = vunpack.c.l.b16 %v697
        %v826 = vunpack.c.l.b16 %v698
        %v827 = vunpack.c.l.b16 %v699
        %v828 = vunpack.c.l.b16 %v700
        %v829 = vunpack.c.l.b16 %v701
        %v830 = vunpack.c.l.b16 %v702
        %v831 = vunpack.c.l.b16 %v703
        %v832 = vunpack.c.l.b16 %v704
        %v833 = vunpack.c.l.b16 %v705
        %v834 = vunpack.c.l.b16 %v706
        %v835 = vunpack.c.l.b16 %v707
        %v836 = vunpack.c.l.b16 %v708
        %v837 = vunpack.c.l.b16 %v709
        %v838 = vunpack.c.l.b16 %v710
        %v839 = vunpack.c.l.b16 %v711
        %v840 = vunpack.c.l.b16 %v712
        %v841 = vunpack.c.l.b16 %v713
        %v842 = vunpack.c.l.b16 %v714
        %v843 = vunpack.c.l.b16 %v715
        %v844 = vunpack.c.l.b16 %v716
        %v845 = vunpack.c.l.b16 %v717
        %v846 = vunpack.c.l.b16 %v718
        %v847 = vunpack.c.l.b16 %v719
        %v848 = vunpack.c.l.b16 %v720
        %v849 = vunpack.c.l.b16 %v721
        %v850 = vunpack.c.l.b16 %v722
        %v851 = vunpack.c.l.b16 %v723
        %v852 = vunpack.c.l.b16 %v724
        %v853 = vunpack.c.l.b16 %v725
        %v854 = vunpack.c.l.b16 %v726
        %v855 = vpack.c.b16 %v792, %v791
        %v856 = vpack.c.b16 %v794, %v793
        %v857 = vpack.c.b16 %v796, %v795
        %v858 = vpack.c.b16 %v798, %v797
        %v859 = vpack.c.b16 %v800, %v799
        %v860 = vpack.c.b16 %v802, %v801
        %v861 = vpack.c.b16 %v804, %v803
        %v862 = vpack.c.b16 %v806, %v805
        %v863 = vpack.c.b16 %v808, %v807
        %v864 = vpack.c.b16 %v810, %v809
        %v865 = vpack.c.b16 %v812, %v811
        %v866 = vpack.c.b16 %v814, %v813
        %v867 = vpack.c.b16 %v816, %v815
        %v868 = vpack.c.b16 %v818, %v817
        %v869 = vpack.c.b16 %v820, %v819
        %v870 = vpack.c.b16 %v822, %v821
        %v871 = vpack.c.b16 %v824, %v823
        %v872 = vpack.c.b16 %v826, %v825
        %v873 = vpack.c.b16 %v828, %v827
        %v874 = vpack.c.b16 %v830, %v829
        %v875 = vpack.c.b16 %v832, %v831
        %v876 = vpack.c.b16 %v834, %v833
        %v877 = vpack.c.b16 %v836, %v835
        %v878 = vpack.c.b16 %v838, %v837
        %v879 = vpack.c.b16 %v840, %v839
        %v880 = vpack.c.b16 %v842, %v841
        %v881 = vpack.c.b16 %v844, %v843
        %v882 = vpack.c.b16 %v846, %v845
        %v883 = vpack.c.b16 %v848, %v847
        %v884 = vpack.c.b16 %v850, %v849
        %v885 = vpack.c.b16 %v852, %v851
        %v886 = vpack.c.b16 %v854, %v853
        %919 = vmatprep.subr.bf16.mxu0 0
        %920 = vmatpush1.bf16.msra.mxu0 %v855
        %921 = vmatprep.subr.bf16.mxu0 0
        %922 = vmatpush1.bf16.msra.mxu0 %v856
        %923 = vmatprep.subr.bf16.mxu0 0
        %924 = vmatpush1.bf16.msra.mxu0 %v857
        %925 = vmatprep.subr.bf16.mxu0 0
        %926 = vmatpush1.bf16.msra.mxu0 %v858
        %927 = vmatprep.subr.bf16.mxu0 0
        %928 = vmatpush1.bf16.msra.mxu0 %v859
        %929 = vmatprep.subr.bf16.mxu0 0
        %930 = vmatpush1.bf16.msra.mxu0 %v860
        %931 = vmatprep.subr.bf16.mxu0 0
        %932 = vmatpush1.bf16.msra.mxu0 %v861
        %933 = vmatprep.subr.bf16.mxu0 0
        %934 = vmatpush1.bf16.msra.mxu0 %v862
        %935 = vmatprep.subr.bf16.mxu0 0
        %936 = vmatpush1.bf16.msra.mxu0 %v863
        %937 = vmatprep.subr.bf16.mxu0 0
        %938 = vmatpush1.bf16.msra.mxu0 %v864
        %939 = vmatprep.subr.bf16.mxu0 0
        %940 = vmatpush1.bf16.msra.mxu0 %v865
        %941 = vmatprep.subr.bf16.mxu0 0
        %942 = vmatpush1.bf16.msra.mxu0 %v866
        %943 = vmatprep.subr.bf16.mxu0 0
        %944 = vmatpush1.bf16.msra.mxu0 %v867
        %945 = vmatprep.subr.bf16.mxu0 0
        %946 = vmatpush1.bf16.msra.mxu0 %v868
        %947 = vmatprep.subr.bf16.mxu0 0
        %948 = vmatpush1.bf16.msra.mxu0 %v869
        %949 = vmatprep.subr.bf16.mxu0 0
        %950 = vmatpush1.bf16.msra.mxu0 %v870
        %951 = vmatprep.mubr.bf16.mxu0 %v660
        %952 = vmatmul.mubr.bf16.gmra.mrb[0].mxu0 %v659
        %v953 = vpop.f32.mrb[0].mxu0
        %v954 = vadd.f32 0.0, %v953
        %v955 = vpop.f32.mrb[0].mxu0
        %v956 = vpop.f32.mrb[0].mxu0
        %v957 = vpop.f32.mrb[0].mxu0
        %958 = vdwg.mxu0
        %959 = vmatprep.subr.bf16.mxu0 0
        %960 = vmatpush1.bf16.msra.mxu0 %v871
        %961 = vmatprep.subr.bf16.mxu0 0
        %962 = vmatpush1.bf16.msra.mxu0 %v872
        %963 = vmatprep.subr.bf16.mxu0 0
        %964 = vmatpush1.bf16.msra.mxu0 %v873
        %965 = vmatprep.subr.bf16.mxu0 0
        %966 = vmatpush1.bf16.msra.mxu0 %v874
        %967 = vmatprep.subr.bf16.mxu0 0
        %968 = vmatpush1.bf16.msra.mxu0 %v875
        %969 = vmatprep.subr.bf16.mxu0 0
        %970 = vmatpush1.bf16.msra.mxu0 %v876
        %971 = vmatprep.subr.bf16.mxu0 0
        %972 = vmatpush1.bf16.msra.mxu0 %v877
        %973 = vmatprep.subr.bf16.mxu0 0
        %974 = vmatpush1.bf16.msra.mxu0 %v878
        %975 = vmatprep.subr.bf16.mxu0 0
        %976 = vmatpush1.bf16.msra.mxu0 %v879
        %977 = vmatprep.subr.bf16.mxu0 0
        %978 = vmatpush1.bf16.msra.mxu0 %v880
        %979 = vmatprep.subr.bf16.mxu0 0
        %980 = vmatpush1.bf16.msra.mxu0 %v881
        %981 = vmatprep.subr.bf16.mxu0 0
        %982 = vmatpush1.bf16.msra.mxu0 %v882
        %983 = vmatprep.subr.bf16.mxu0 0
        %984 = vmatpush1.bf16.msra.mxu0 %v883
        %985 = vmatprep.subr.bf16.mxu0 0
        %986 = vmatpush1.bf16.msra.mxu0 %v884
        %987 = vmatprep.subr.bf16.mxu0 0
        %988 = vmatpush1.bf16.msra.mxu0 %v885
        %989 = vmatprep.subr.bf16.mxu0 0
        %990 = vmatpush1.bf16.msra.mxu0 %v886
        %991 = vmatprep.mubr.bf16.mxu0 %v662
        %992 = vmatmul.mubr.bf16.gmra.mrb[0].mxu0 %v661
        %v993 = vpop.f32.mrb[0].mxu0
        %v994 = vadd.f32 %v954, %v993
        %v995 = vpop.f32.mrb[0].mxu0
        %v996 = vpop.f32.mrb[0].mxu0
        %v997 = vpop.f32.mrb[0].mxu0
        %998 = vdwg.mxu0
        %v999 = vadd.f32 %v658, %v994
        %1000 = vst [vmem:[#allocation2] sm:$0xff] %v999
        // Predicated region
        $region57: #{tpu_custom_call.1} parent=39 // pred_check
          %p1001 = pneg %p319
        $region58: #{tpu_custom_call.1} parent=39 // pred_check_branch
          %1003 = sbr.rel (%p1001) target = $region60
        $region59: #{tpu_custom_call.1} parent=39 // pred_region
          %v1004 = vld [vmem:[#allocation2] sm:$0xff]
          %v1005 = vld [vmem:[%s4] sm:$0x1]
          %v1007 = vlaneseq
          %v1008 = vshrl.u32 %v1007, 7
          %v1009 = vsub.s32 0, %v1008
          %v1010 = vrot.slane %v1005, %v1009
          %v1012 = vadd.f32 %v1004, %v1010
          %1013 = vst [vmem:[%s310] sm:$0xff] %v1012
        $region60: #{tpu_custom_call.1} parent=39 // pred_fallthru
          _
        %s1014 = sand.u32 %s168, 1
        %s1015 = scalar_lea.sflag [#allocation5], %s1014
        %s1016 = sand.u32 %s168, 1
        %s1017 = smul.addr %s1016, 8
        %s1018 = scalar_lea.vmem [#allocation9], %s1017
        // Predicated region
        $region61: #{tpu_custom_call.1} parent=39 // pred_check
          %p1019 = pneg %p178
        $region62: #{tpu_custom_call.1} parent=39 // pred_check_branch
          %1021 = sbr.rel (%p1019) target = $region64
        $region63: #{tpu_custom_call.1} parent=39 // pred_region
          %s1023 = ssub.s32 128, 128
          %1024 = vsyncadd %s1015, %s1023
          %s1025 = smul.addr %s27, 128
          %s1026 = scalar_lea.hbm %s5, %s1025
          %s1028 = sshll.u32 %s1018, 4
          %s1029 = int_to_ptr.vmem [resolvable:$true] %s1028
          %1031 = dma.vmem_to_hbm [thread:$0]  %s1029, 128, %s1026, %s1015
        $region64: #{tpu_custom_call.1} parent=39 // pred_fallthru
          _
      $region40: #{tpu_custom_call.1} parent=5 // pred_fallthru
        _
      %p1032 = scmp.le.s32.totalorder 2, %s18
      // Predicated region
      $region65: #{tpu_custom_call.1} parent=5 // pred_check
        %p1033 = pneg %p1032
      $region66: #{tpu_custom_call.1} parent=5 // pred_check_branch
        %1035 = sbr.rel (%p1033) target = $region68
      $region67: #{tpu_custom_call.1} parent=5 // pred_region
        %s1036 = ssub.s32 %s18, 2
        // Predicated region
        $region69: #{tpu_custom_call.1} parent=67 // pred_check
          %p1037 = pneg %p184
        $region70: #{tpu_custom_call.1} parent=67 // pred_check_branch
          %1039 = sbr.rel (%p1037) target = $region72
        $region71: #{tpu_custom_call.1} parent=67 // pred_region
          %s1040 = sand.u32 %s169, 1
          %s1041 = scalar_lea.sflag [#allocation5], %s1040
          %s1042 = sand.u32 %s169, 1
          %s1043 = smul.addr %s1042, 8
          %s1044 = scalar_lea.vmem [#allocation9], %s1043
          %1045 = dma.done %s1041, 128
        $region72: #{tpu_custom_call.1} parent=67 // pred_fallthru
          _
      $region68: #{tpu_custom_call.1} parent=5 // pred_fallthru
        _
    $region6: #{tpu_custom_call.1} parent=1 // loop_footer
      %s22 = sadd.s32 1, %s18
    $region7: #{tpu_custom_call.1} parent=1 // loop_footer_branch
      %17 = sbr.rel target = $region3
    $region8: #{tpu_custom_call.1} parent=1 // loop_exit
      _
    %1046 = vsyncpa [#allocation4], 1
    %s1047 = scalar_lea.sflag [#allocation4], 1
    %1048 = vsyncpa %s1047, 1
    %1049 = vsyncpa [#allocation7], 1
    %1050 = vsyncpa [#allocation5], 1
    %s1051 = scalar_lea.sflag [#allocation5], 1
    %1052 = vsyncpa %s1051, 1

</llo_original>
